<compile_context>
chip_gen: v7x
topology: tpu7x:2x2x1
jax: 0.10.0
libtpu: 0.0.40
codegen_flags: <defaults>
</compile_context>

<pallas_src>
import functools

import jax
import jax.numpy as jnp
import numpy as np
from jax.experimental import pallas as pl
from jax.experimental.pallas import tpu as pltpu

_LANE = 128              # lane width: batch tile granularity
_SUBLANE = 8             # sublane packing granularity for f32
_DEFAULT_TILE_B = 4096   # batch rows (lanes) per grid step


def _round_up(x, n):
    return ((x + n - 1) // n) * n


def _crps_kernel(fc_ref, ob_ref, out_ref, *, m):
    # fc_ref : (m_pad, TILE_B) VMEM   fc_ref[j, b] = j-th smallest member of row b
    #                                 (rows j >= m are zero padding)
    # ob_ref : (1, TILE_B)     VMEM   per-row observation (lane-aligned with batch)
    # out_ref: (1, TILE_B)     VMEM   per-row crps (lane-dense output)
    m_pad = fc_ref.shape[0]
    x = fc_ref[...]                                     # (m_pad, TILE_B) f32
    ob = ob_ref[...]                                    # (1, TILE_B), sublane-broadcast

    # Per-member constants: depend only on the sublane (member) index.  Built
    # once per grid step as (m_pad, 1) vectors, lane-broadcast by the VPU.
    j = jax.lax.broadcasted_iota(jnp.int32, (m_pad, 1), 0)
    valid = j < m
    inv_m = jnp.float32(1.0 / m)
    inv_m2 = jnp.float32(1.0 / (m * m))
    c_abs = jnp.where(valid, inv_m, 0.0)                # coefficient of |x_j - obs|
    w = jnp.where(valid,
                  (2 * j - (m - 1)).astype(jnp.float32) * inv_m2,
                  0.0)                                  # sorted-rank weight of x_j

    contrib = c_abs * jnp.abs(x - ob) - w * x           # (m_pad, TILE_B)

    # Single reduction over the member (sublane) axis -> lane-major crps row.
    out_ref[...] = jnp.sum(contrib, axis=0, keepdims=True)


def crps_loss_batched(ensemble_members, observations, *, tile_b=_DEFAULT_TILE_B):
    """Batched CRPS.

    ensemble_members: (B, m) float array, one ensemble per row (unsorted OK)
    observations:     (B,)   float array
    returns:          (B,)   float32 crps per row
    """
    ens = jnp.asarray(ensemble_members, jnp.float32)
    obs = jnp.asarray(observations, jnp.float32).reshape(-1)
    B, m = int(ens.shape[0]), int(ens.shape[1])
    assert obs.shape[0] == B
    assert m >= 1

    # Member padding: only up to the next multiple of 8 sublanes (not 128).
    m_pad = _round_up(m, _SUBLANE)

    # TILE_B: multiple of 128 (lane-dense blocks), shrunk for small batches,
    # and clamped so the grid has >= 2 steps when B allows it (keeps both
    # TensorCores busy on v7x; harmless elsewhere).
    tile_b = _round_up(int(tile_b), _LANE)
    tile_b = min(tile_b, _round_up(B, _LANE))
    tile_b = max(_LANE, min(tile_b, _round_up(pl.cdiv(B, 2), _LANE)))
    num_tiles = pl.cdiv(B, tile_b)
    b_pad = num_tiles * tile_b

    # Glue (plain XLA): sort members, go member-major, zero-pad to
    # (m_pad, b_pad).  Zero padding is safe: member rows j >= m are masked
    # in-kernel, and padded batch columns (zero members, zero obs) give
    # crps = 0 which is sliced off below.
    fc_t = jnp.pad(jnp.sort(ens, axis=-1).T,
                   ((0, m_pad - m), (0, b_pad - B)))          # (m_pad, b_pad)
    ob_t = jnp.pad(obs[None, :], ((0, 0), (0, b_pad - B)))    # (1, b_pad)

    out = pl.pallas_call(
        functools.partial(_crps_kernel, m=m),
        out_shape=jax.ShapeDtypeStruct((1, b_pad), jnp.float32),
        grid=(num_tiles,),
        in_specs=[
            pl.BlockSpec((m_pad, tile_b), lambda i: (0, i)),   # sorted members
            pl.BlockSpec((1, tile_b), lambda i: (0, i)),       # observations
        ],
        out_specs=pl.BlockSpec((1, tile_b), lambda i: (0, i)), # lane-dense crps
        compiler_params=pltpu.CompilerParams(
            dimension_semantics=("parallel",)),  # batch tiles across TCs on v7x
    )(fc_t, ob_t)

    return out[0, :B]


def crps_loss(ensemble_members, observation):
    """Equivalent of CRPSLoss.forward — returns the scalar crps (float32).

    TODO(synk): the PyTorch forward returns a Python tuple (nan, nan, nan) when
    the inputs contain NaN; that data-dependent Python branch is not
    representable in a traced kernel — NaNs simply propagate through instead.
    """
    ens = jnp.asarray(ensemble_members, jnp.float32).reshape(1, -1)
    obs = jnp.asarray(observation, jnp.float32).reshape(1)
    return crps_loss_batched(ens, obs, tile_b=_LANE)[0]


if __name__ == "__main__":
    key = jax.random.PRNGKey(0)
    k1, k2 = jax.random.split(key)

    # small batched example: 16 ensembles of 10 members + one observation each
    B, m = 16, 10
    ensembles = jax.random.normal(k1, (B, m), jnp.float32) * 2.0 + 3.0
    observations = jax.random.normal(k2, (B,), jnp.float32) * 2.0 + 3.0

    crps = jax.block_until_ready(crps_loss_batched(ensembles, observations))

    # reference: closed-form energy score in float64, identical to the piecewise
    # integral computed by the PyTorch module
    e = np.asarray(ensembles, np.float64)
    y = np.asarray(observations, np.float64)
    ref = (np.mean(np.abs(e - y[:, None]), axis=1)
           - 0.5 * np.mean(np.abs(e[:, :, None] - e[:, None, :]), axis=(1, 2)))
    np.testing.assert_allclose(np.asarray(crps), ref, rtol=1e-5, atol=5e-6)

    # docstring examples from the PyTorch module (scalar forward path)
    c1 = float(jax.block_until_ready(
        crps_loss(jnp.arange(1, 5, dtype=jnp.float32), 3.5)))
    np.testing.assert_allclose(c1, 0.625, rtol=1e-6)
    c2 = float(jax.block_until_ready(
        crps_loss(jnp.arange(1, 11, dtype=jnp.float32), 8.3)))
    np.testing.assert_allclose(c2, 1.63, rtol=1e-5)

    print("KERNEL_OK")
</pallas_src>

<mosaic_0001>
module attributes {stable_mosaic.version = 11 : i64} {
  func.func @_crps_kernel(%arg0: i32, %arg1: memref<16x128xf32, #tpu.memory_space<vmem>>, %arg2: memref<1x128xf32, #tpu.memory_space<vmem>>, %arg3: memref<1x128xf32, #tpu.memory_space<vmem>>) attributes {dimension_semantics = [#tpu.dimension_semantics<parallel>], iteration_bounds = array<i64: 1>, scalar_prefetch = 0 : i64, scratch_operands = 0 : i64, tpu.core_type = #tpu.core_type<tc>, window_params = [{transform_indices = @transform_0, window_bounds = array<i64: 16, 128>}, {transform_indices = @transform_1, window_bounds = array<i64: 1, 128>}, {transform_indices = @transform_2, window_bounds = array<i64: 1, 128>}]} {
    %c0 = arith.constant 0 : index
    %c0_0 = arith.constant 0 : index
    %0 = vector.load %arg1[%c0, %c0_0] : memref<16x128xf32, #tpu.memory_space<vmem>>, vector<16x128xf32>
    %c0_1 = arith.constant 0 : index
    %c0_2 = arith.constant 0 : index
    %1 = vector.load %arg2[%c0_1, %c0_2] : memref<1x128xf32, #tpu.memory_space<vmem>>, vector<1x128xf32>
    %2 = tpu.iota {dimensions = array<i32: 0>} : vector<16x1xi32>
    %c10_i32 = arith.constant 10 : i32
    %3 = vector.broadcast %c10_i32 : i32 to vector<16x1xi32>
    %4 = arith.cmpi slt, %2, %3 : vector<16x1xi32>
    %cst = arith.constant 1.000000e-01 : f32
    %cst_3 = arith.constant 0.000000e+00 : f32
    %5 = vector.broadcast %cst : f32 to vector<16x1xf32>
    %6 = vector.broadcast %cst_3 : f32 to vector<16x1xf32>
    %7 = arith.select %4, %5, %6 : vector<16x1xi1>, vector<16x1xf32>
    %c2_i32 = arith.constant 2 : i32
    %8 = vector.broadcast %c2_i32 : i32 to vector<16x1xi32>
    %9 = arith.muli %8, %2 : vector<16x1xi32>
    %c9_i32 = arith.constant 9 : i32
    %10 = vector.broadcast %c9_i32 : i32 to vector<16x1xi32>
    %11 = arith.subi %9, %10 : vector<16x1xi32>
    %12 = arith.sitofp %11 : vector<16x1xi32> to vector<16x1xf32>
    %cst_4 = arith.constant 0.00999999977 : f32
    %13 = vector.broadcast %cst_4 : f32 to vector<16x1xf32>
    %14 = arith.mulf %12, %13 : vector<16x1xf32>
    %cst_5 = arith.constant 0.000000e+00 : f32
    %15 = vector.broadcast %cst_5 : f32 to vector<16x1xf32>
    %16 = arith.select %4, %14, %15 : vector<16x1xi1>, vector<16x1xf32>
    %17 = vector.broadcast %1 : vector<1x128xf32> to vector<16x128xf32>
    %18 = arith.subf %0, %17 : vector<16x128xf32>
    %19 = math.absf %18 : vector<16x128xf32>
    %20 = vector.broadcast %7 : vector<16x1xf32> to vector<16x128xf32>
    %21 = arith.mulf %20, %19 : vector<16x128xf32>
    %22 = vector.broadcast %16 : vector<16x1xf32> to vector<16x128xf32>
    %23 = arith.mulf %22, %0 : vector<16x128xf32>
    %24 = arith.subf %21, %23 : vector<16x128xf32>
    %cst_6 = arith.constant dense<0.000000e+00> : vector<128xf32>
    %25 = vector.multi_reduction <add>, %24, %cst_6 [0] : vector<16x128xf32> to vector<128xf32>
    %26 = vector.shape_cast %25 : vector<128xf32> to vector<1x128xf32>
    %c0_7 = arith.constant 0 : index
    %c0_8 = arith.constant 0 : index
    %27 = vector.load %arg3[%c0_7, %c0_8] : memref<1x128xf32, #tpu.memory_space<vmem>>, vector<1x128xf32>
    tpu.vector_store %arg3[%c0_7, %c0_8], %26 {strides = array<i32>} : memref<1x128xf32, #tpu.memory_space<vmem>>, vector<1x128xf32>,
    return
  }
  func.func @transform_0(%arg0: i32) -> (i32, i32) {
    %c0_i32 = arith.constant 0 : i32
    %c0_i32_0 = arith.constant 0 : i32
    return %c0_i32, %arg0 : i32, i32
  }
  func.func @transform_1(%arg0: i32) -> (i32, i32) {
    %c0_i32 = arith.constant 0 : i32
    %c0_i32_0 = arith.constant 0 : i32
    return %c0_i32, %arg0 : i32, i32
  }
  func.func @transform_2(%arg0: i32) -> (i32, i32) {
    %c0_i32 = arith.constant 0 : i32
    %c0_i32_0 = arith.constant 0 : i32
    return %c0_i32, %arg0 : i32, i32
  }
}

</mosaic_0001>

<llo_original>
// kernel: tpu_custom_call.1
$region0: #{tpu_custom_call.1}
  #allocation0 [shape = 'u32[]', space=smem, size = 0x4, offset = 0x4, fixed_abs, tag = 'smem constant byte address 0x4 - core index']
  #allocation1 [shape = 'u32[144,128]{1,0:T(1,128)}', space=vmem, size = 0x12000, scoped, tag = 'internal scratch']
  %s0 = inlined_call_operand.hbm [shape: f32[16,128], index: 0, kind: input, shape index: {}]
  %s1 = inlined_call_operand.vmem [shape: f32[1,128], index: 1, kind: input, shape index: {}]
  %s2 = inlined_call_operand.hbm [shape: f32[1,128], index: 2, kind: output, shape index: {}]
  %s3 = sld [smem:[#allocation0]]
  $region22: #{tpu_custom_call.1} parent=0
    _
  %s5 = ssub.s32 1, %s3
  %s6 = scalar_select 0, %s5, %s3
  $region1: #{tpu_custom_call.1} parent=0
    #allocation2 [shape = 'u8[8192]{0}', space=vmem, size = 0x2000, scoped, tag = 'input window, operand 0, single buffered']
    #allocation3 [shape = 's32[1]{0}', space=sflag, size = 0x4, scoped, tag = 'scoped memory for tpu_custom_call.1']
    #allocation4 [shape = 's32[1]{0}', space=sflag, size = 0x4, scoped, tag = 'scoped memory for tpu_custom_call.1']
    #allocation5 [shape = 'u8[512]{0}', space=vmem, size = 0x400, scoped, tag = 'output window, operand 0, single buffered']
    %7 = vsyncpa [#allocation3], 0
    %8 = vsyncpa [#allocation4], 0
    // Predicated region
    $region2: #{tpu_custom_call.1} parent=1 // pred_check
      _
    $region3: #{tpu_custom_call.1} parent=1 // pred_check_branch
      %10 = sbr.rel (0) target = $region5
    $region4: #{tpu_custom_call.1} parent=1 // pred_region
      %s12 = ssub.s32 256, 256
      %13 = vsyncadd [#allocation3], %s12
      %s14 = sshll.u32 [#allocation2], 4
      %s15 = int_to_ptr.vmem [resolvable:$true] %s14
      %20 = dma.hbm_to_vmem [thread:$0]  %s0, 256, %s15, [#allocation3], 128, 128, 8
    $region5: #{tpu_custom_call.1} parent=1 // pred_fallthru
      _
    // Predicated region
    $region6: #{tpu_custom_call.1} parent=1 // pred_check
      _
    $region7: #{tpu_custom_call.1} parent=1 // pred_check_branch
      %22 = sbr.rel (0) target = $region9
    $region8: #{tpu_custom_call.1} parent=1 // pred_region
      _
    $region9: #{tpu_custom_call.1} parent=1 // pred_fallthru
      _
    // Predicated region
    $region10: #{tpu_custom_call.1} parent=1 // pred_check
      _
    $region11: #{tpu_custom_call.1} parent=1 // pred_check_branch
      %24 = sbr.rel (0) target = $region13
    $region12: #{tpu_custom_call.1} parent=1 // pred_region
      %25 = dma.done [#allocation3], 256
    $region13: #{tpu_custom_call.1} parent=1 // pred_fallthru
      _
    %v26 = vld [vmem:[#allocation2] sm:$0xff]
    %v27 = vld [vmem:[#allocation2 + $0x8] sm:$0xff]
    %v28 = vld [vmem:[%s1] sm:$0x1]
    %v29 = vlaneseq
    %v30 = vshrl.u32 %v29, 7
    %v31 = vadd.s32 %v30, 8
    %vm32 = vcmp.lt.s32.totalorder %v30, 10
    %vm33 = vcmp.lt.s32.totalorder %v31, 10
    %v34 = vsel %vm32, 0.1, 0.0
    %v35 = vsel %vm33, 0.1, 0.0
    %v36 = vmul.u32 %v30, 2
    %v37 = vmul.u32 %v31, 2
    %v38 = vsub.s32 %v36, 9
    %v39 = vsub.s32 %v37, 9
    %v40 = vcvt.s32.f32 %v38
    %v41 = vcvt.s32.f32 %v39
    %v42 = vmul.f32 %v40, 0.01
    %v43 = vmul.f32 %v41, 0.01
    %v44 = vsel %vm32, %v42, 0.0
    %v45 = vsel %vm33, %v43, 0.0
    %v47 = vlaneseq
    %v48 = vshrl.u32 %v47, 7
    %v49 = vsub.s32 0, %v48
    %v50 = vrot.slane %v28, %v49
    %v52 = vsub.f32 %v26, %v50
    %v53 = vsub.f32 %v27, %v50
    %v54 = vand.u32 2147483647, %v52
    %v55 = vand.u32 2147483647, %v53
    %v56 = vmul.f32 %v34, %v54
    %v57 = vmul.f32 %v35, %v55
    %v58 = vmul.f32 %v44, %v26
    %v59 = vmul.f32 %v45, %v27
    %v60 = vsub.f32 %v56, %v58
    %v61 = vsub.f32 %v57, %v59
    %v62 = vadd.f32 %v60, %v61
    %v63 = vrot.slane %v62, 4
    %v64 = vadd.f32 %v62, %v63
    %v65 = vrot.slane %v64, 2
    %v66 = vadd.f32 %v64, %v65
    %v67 = vrot.slane %v66, 1
    %v68 = vadd.f32 %v66, %v67
    %69 = vst [vmem:[#allocation5] sm:$0x1] %v68
    // Predicated region
    $region14: #{tpu_custom_call.1} parent=1 // pred_check
      _
    $region15: #{tpu_custom_call.1} parent=1 // pred_check_branch
      %71 = sbr.rel (0) target = $region17
    $region16: #{tpu_custom_call.1} parent=1 // pred_region
      %s73 = ssub.s32 16, 16
      %74 = vsyncadd [#allocation4], %s73
      %s76 = sshll.u32 [#allocation5], 4
      %s77 = int_to_ptr.vmem [resolvable:$true] %s76
      %79 = dma.vmem_to_hbm [thread:$0]  %s77, 16, %s2, [#allocation4]
    $region17: #{tpu_custom_call.1} parent=1 // pred_fallthru
      _
    // Predicated region
    $region18: #{tpu_custom_call.1} parent=1 // pred_check
      _
    $region19: #{tpu_custom_call.1} parent=1 // pred_check_branch
      %81 = sbr.rel (0) target = $region21
    $region20: #{tpu_custom_call.1} parent=1 // pred_region
      %82 = dma.done [#allocation4], 16
    $region21: #{tpu_custom_call.1} parent=1 // pred_fallthru
      _
    %83 = vsyncpa [#allocation3], 1
    %84 = vsyncpa [#allocation4], 1

</llo_original>
